<compile_context>
chip_gen: v6e
topology: v6e:2x2x1
jax: 0.10.0
libtpu: 0.0.40
codegen_flags: <defaults>
</compile_context>

<pallas_src>
import functools

import jax
import jax.numpy as jnp
from jax.experimental import pallas as pl
from jax.experimental.pallas import tpu as pltpu

_EPS = 1e-6

# Un-pipelined single-block path: keep it launch-overhead sized (review item 2).
_FLAT_LIMIT_BYTES = 1 * 1024 * 1024
# Awkward-H patches (no multiple-of-8 row tiling) still beat the XLA fallback
# as a single flat block up to a few MiB.
_FLAT_AWKWARD_LIMIT_BYTES = 4 * 1024 * 1024


def _round_up(x, m):
    return ((x + m - 1) // m) * m


def _vmem_budget():
    """(per-block byte target, vmem_limit_bytes) per generation (review item 1)."""
    block_target = 3 * 1024 * 1024          # safe on v7x (64 MiB physical VMEM)
    vmem_limit = 48 * 1024 * 1024
    try:
        cap = pltpu.get_tpu_info().vmem_capacity_bytes
        if cap >= 100 * 1024 * 1024:        # v5e / v6e: 128 MiB physical
            block_target = 8 * 1024 * 1024
            vmem_limit = 80 * 1024 * 1024
    except Exception:
        pass                                # unknown chip -> conservative defaults
    return block_target, vmem_limit


# ---------------------------------------------------------------------------
# Kernel 1: small patches, lane-dense flattened (C, H*Wp) layout, one VMEM
# block, scalar SMEM output.  Wp may be W zero-padded to a multiple of 128;
# pad lanes are masked to contribute exactly 0.
# ---------------------------------------------------------------------------
def _tv_loss_flat_kernel(x_ref, o_ref, *, row_len, real_w, inv_numel):
    x = x_ref[...].astype(jnp.float32)                  # (C, H*Wp), lane-dense
    hw = x.shape[-1]
    eps = jnp.float32(_EPS)

    flat = jax.lax.broadcasted_iota(jnp.int32, x.shape, 1)
    col = flat % row_len

    # W-neighbour: element at flat index i+1 (same spatial row, real cols only).
    x_w = pltpu.roll(x, shift=hw - 1, axis=1) if hw > 1 else x
    valid_w = col < (real_w - 1)

    # H-neighbour: element at flat index i+Wp (same channel, real cols only).
    x_h = pltpu.roll(x, shift=hw - row_len, axis=1) if hw > row_len else x
    valid_h = jnp.logical_and(flat < (hw - row_len), col < real_w)

    # Mask AFTER abs(diff + eps); both TV terms fused into one reduction tree.
    contrib = jnp.where(valid_w, jnp.abs(x_w - x + eps), 0.0)
    contrib = contrib + jnp.where(valid_h, jnp.abs(x_h - x + eps), 0.0)
    o_ref[0, 0] = jnp.sum(contrib) * jnp.float32(inv_numel)


# ---------------------------------------------------------------------------
# Kernel 2: large patches. Grid = (splits, blocks); outer axis is "parallel"
# (dual-TensorCore on v7x), inner axis streams (C, tH, Wp) blocks over H with
# a VMEM carry of the previous block's last row.  Masks are hoisted to VMEM
# scratch at i == 0; the accumulator is a lane vector, collapsed in the wrapper.
# ---------------------------------------------------------------------------
def _tv_loss_grid_kernel(x_ref, o_ref, acc_ref, carry_ref,
                         wmask_ref, wvalid_ref, hwmask_ref, *, real_w):
    i = pl.program_id(1)
    n = pl.num_programs(1)
    eps = jnp.float32(_EPS)
    _, th, wp = x_ref.shape

    @pl.when(i == 0)
    def _init():
        acc_ref[...] = jnp.zeros_like(acc_ref)
        # Hoisted 0/1 masks (review item 4): built once per core, applied with
        # a multiply in the hot loop instead of iota + compare + where.
        lane2 = jax.lax.broadcasted_iota(jnp.int32, (1, 1, wp), 2)
        wmask_ref[...] = (lane2 < real_w - 1).astype(jnp.float32)
        wvalid_ref[...] = (lane2 < real_w).astype(jnp.float32)
        lane3 = jax.lax.broadcasted_iota(jnp.int32, (1, th, wp), 2)
        row3 = jax.lax.broadcasted_iota(jnp.int32, (1, th, wp), 1)
        hwmask_ref[...] = jnp.logical_and(
            row3 < th - 1, lane3 < real_w).astype(jnp.float32)

    x = x_ref[...].astype(jnp.float32)                  # (C, tH, Wp)

    # Neighbour shifts on the XLU (no relayout copies / odd-size intermediates).
    x_w = pltpu.roll(x, shift=wp - 1, axis=2) if wp > 1 else x
    x_h = pltpu.roll(x, shift=th - 1, axis=1) if th > 1 else x

    # "next minus current" + eps, then mask (order matters because of the eps).
    contrib = (jnp.abs(x_w - x + eps) * wmask_ref[...]
               + jnp.abs(x_h - x + eps) * hwmask_ref[...])
    # Lane-vector accumulator (review item 9): only sublane-direction sums per
    # block, cross-lane collapse deferred to the wrapper.
    acc_ref[...] += jnp.sum(jnp.sum(contrib, axis=1, keepdims=True),
                            axis=0, keepdims=True)

    # Inter-block H-difference: first row of this block vs. the previous
    # block's last row (carried across the sequential inner axis).
    @pl.when(i > 0)
    def _cross():
        cross = jnp.abs(x[:, 0:1, :] - carry_ref[...] + eps) * wvalid_ref[...]
        acc_ref[...] += jnp.sum(cross, axis=0, keepdims=True)

    carry_ref[...] = x[:, th - 1:th, :]

    @pl.when(i == n - 1)
    def _finalize():
        o_ref[...] = acc_ref[...]                       # (1, 1, Wp) lane-dense


# ---------------------------------------------------------------------------
# Wrappers
# ---------------------------------------------------------------------------
def _tv_loss_flat_call(adv_patch):
    c, h, w = adv_patch.shape
    if (h * w) % 128 == 0:
        wp, x = w, adv_patch
    else:
        wp = _round_up(w, 128)
        x = jnp.pad(adv_patch, ((0, 0), (0, 0), (0, wp - w)))
    x2d = x.reshape(c, h * wp)                          # lane-dense last dim
    kernel = functools.partial(
        _tv_loss_flat_kernel, row_len=wp, real_w=w,
        inv_numel=1.0 / float(c * h * w))
    out = pl.pallas_call(
        kernel,
        out_shape=jax.ShapeDtypeStruct((1, 1), jnp.float32),
        in_specs=[pl.BlockSpec(memory_space=pltpu.MemorySpace.VMEM)],
        out_specs=pl.BlockSpec(memory_space=pltpu.MemorySpace.SMEM),
        compiler_params=pltpu.CompilerParams(
            vmem_limit_bytes=32 * 1024 * 1024),
    )(x2d)
    return out[0, 0]


def _tv_loss_gridded_call(adv_patch, block_rows, vmem_limit):
    c, h, w = adv_patch.shape
    if w % 128 == 0:
        wp, x = w, adv_patch
    else:
        wp = _round_up(w, 128)
        x = jnp.pad(adv_patch, ((0, 0), (0, 0), (0, wp - w)))

    th = block_rows
    nblocks = h // th
    # Split H across both TensorCores when the block count splits evenly
    # (review item 3).  Harmless (sequential) on single-core chips.
    num_splits = 2 if (nblocks >= 2 and nblocks % 2 == 0) else 1
    bps = nblocks // num_splits

    kernel = functools.partial(_tv_loss_grid_kernel, real_w=w)
    partials = pl.pallas_call(
        kernel,
        out_shape=jax.ShapeDtypeStruct((num_splits, 1, wp), jnp.float32),
        grid=(num_splits, bps),
        in_specs=[pl.BlockSpec((c, th, wp),
                               lambda s, i: (0, s * bps + i, 0))],
        out_specs=pl.BlockSpec((1, 1, wp), lambda s, i: (s, 0, 0)),
        scratch_shapes=[
            pltpu.VMEM((1, 1, wp), jnp.float32),        # lane-vector accumulator
            pltpu.VMEM((c, 1, wp), jnp.float32),        # previous block's last row
            pltpu.VMEM((1, 1, wp), jnp.float32),        # hoisted W-diff mask
            pltpu.VMEM((1, 1, wp), jnp.float32),        # hoisted real-lane mask
            pltpu.VMEM((1, th, wp), jnp.float32),       # hoisted H-diff mask
        ],
        compiler_params=pltpu.CompilerParams(
            dimension_semantics=("parallel", "arbitrary"),
            vmem_limit_bytes=vmem_limit,
        ),
    )(x)

    total = jnp.sum(partials)                           # pad lanes are exact zeros
    if num_splits == 2:
        # Single seam row-pair between the two splits, added exactly once.
        xs = adv_patch.astype(jnp.float32)
        seam_row = bps * th
        total = total + jnp.sum(
            jnp.abs(xs[:, seam_row, :] - xs[:, seam_row - 1, :] + jnp.float32(_EPS)))
    return total / jnp.float32(c * h * w)


def _choose_block_rows(c, h, wp, target_bytes):
    """Largest tH dividing H, multiple of 8, with C*tH*Wp*4 under the block cap."""
    bytes_per_row = c * wp * 4
    max_rows = max(target_bytes // bytes_per_row, 8)
    best = None
    th = 8
    while th <= min(h, max_rows):
        if h % th == 0:
            best = th
        th += 8
    return best


def _flat_bytes(c, h, w):
    wp = w if (h * w) % 128 == 0 else _round_up(w, 128)
    return c * h * wp * 4


def tv_loss(adv_patch, *, block_rows=None):
    """Pallas TV loss. adv_patch: (C, H, W) float array -> scalar float32."""
    c, h, w = adv_patch.shape
    block_target, vmem_limit = _vmem_budget()

    # 1) Tiny patches: single lane-dense flattened block (launch-bound anyway).
    if block_rows is None and _flat_bytes(c, h, w) <= _FLAT_LIMIT_BYTES:
        return _tv_loss_flat_call(adv_patch)

    # 2) Pipelined gridded reduction over H (W is padded to a lane multiple
    #    inside the wrapper if needed, so any W is accepted).
    wp = w if w % 128 == 0 else _round_up(w, 128)
    th = block_rows if block_rows is not None else _choose_block_rows(
        c, h, wp, block_target)
    if th is not None and 0 < th <= h and h % th == 0 and th % 8 == 0:
        return _tv_loss_gridded_call(adv_patch, th, vmem_limit)

    # 3) Awkward H (no multiple-of-8 tiling): single flat block up to a few MiB.
    if _flat_bytes(c, h, w) <= _FLAT_AWKWARD_LIMIT_BYTES:
        return _tv_loss_flat_call(adv_patch)

    # TODO(synk): very large patches whose H has no multiple-of-8 divisor fall
    # back to the fused XLA path (would need either H padding plus row-validity
    # masking, or partial last blocks).
    return tv_loss_ref(adv_patch)


def tv_loss_ref(adv_patch):
    """Pure-JAX reference matching the PyTorch module exactly."""
    x = adv_patch.astype(jnp.float32)
    tvcomp1 = jnp.sum(jnp.abs(x[:, :, 1:] - x[:, :, :-1] + 1e-6))
    tvcomp2 = jnp.sum(jnp.abs(x[:, 1:, :] - x[:, :-1, :] + 1e-6))
    return (tvcomp1 + tvcomp2) / x.size


if __name__ == "__main__":
    key = jax.random.PRNGKey(0)
    k1, k2, k3, k4 = jax.random.split(key, 4)

    # 1) Typical small adversarial patch: flat single-block kernel, no padding.
    p1 = jax.random.uniform(k1, (3, 16, 16), dtype=jnp.float32)
    o1 = jax.block_until_ready(tv_loss(p1))
    r1 = jax.block_until_ready(tv_loss_ref(p1))
    assert jnp.allclose(o1, r1, rtol=1e-4, atol=1e-6), (o1, r1)

    # 2) Lane-aligned patch, explicit tiling: gridded path, 4 blocks, 2-way
    #    split (seam handled in the wrapper), carry row across blocks.
    p2 = jax.random.uniform(k2, (3, 64, 128), dtype=jnp.float32)
    o2 = jax.block_until_ready(tv_loss(p2, block_rows=16))
    r2 = jax.block_until_ready(tv_loss_ref(p2))
    assert jnp.allclose(o2, r2, rtol=1e-4, atol=1e-6), (o2, r2)

    # 3) Unaligned W (96 -> padded to 128): gridded path with masked pad lanes,
    #    odd block count -> single split, carry row exercised.
    p3 = jax.random.uniform(k3, (3, 40, 96), dtype=jnp.float32)
    o3 = jax.block_until_ready(tv_loss(p3, block_rows=8))
    r3 = jax.block_until_ready(tv_loss_ref(p3))
    assert jnp.allclose(o3, r3, rtol=1e-4, atol=1e-6), (o3, r3)

    # 4) Awkward small shape (H*W not a lane multiple): flat path with padding.
    p4 = jax.random.uniform(k4, (3, 30, 20), dtype=jnp.float32)
    o4 = jax.block_until_ready(tv_loss(p4))
    r4 = jax.block_until_ready(tv_loss_ref(p4))
    assert jnp.allclose(o4, r4, rtol=1e-4, atol=1e-6), (o4, r4)

    print("KERNEL_OK")
</pallas_src>

<mosaic_0001>
module attributes {stable_mosaic.version = 11 : i64} {
  func.func @_tv_loss_flat_kernel(%arg0: memref<3x256xf32, #tpu.memory_space<vmem>>, %arg1: memref<1x1xf32, #tpu.memory_space<smem>>) attributes {dimension_semantics = [], scalar_prefetch = 0 : i64, scratch_operands = 0 : i64, tpu.core_type = #tpu.core_type<tc>} {
    %c0 = arith.constant 0 : index
    %c0_0 = arith.constant 0 : index
    %0 = vector.load %arg0[%c0, %c0_0] : memref<3x256xf32, #tpu.memory_space<vmem>>, vector<3x256xf32>
    %1 = tpu.iota {dimensions = array<i32: 1>} : vector<3x256xi32>
    %c16_i32 = arith.constant 16 : i32
    %c0_i32 = arith.constant 0 : i32
    %2 = arith.cmpi eq, %c16_i32, %c0_i32 : i32
    %c1_i32 = arith.constant 1 : i32
    %3 = arith.select %2, %c1_i32, %c16_i32 : i32
    %4 = vector.broadcast %3 : i32 to vector<3x256xi32>
    %5 = arith.remsi %1, %4 : vector<3x256xi32>
    %c0_i32_1 = arith.constant 0 : i32
    %6 = vector.broadcast %c0_i32_1 : i32 to vector<3x256xi32>
    %7 = arith.cmpi ne, %5, %6 : vector<3x256xi32>
    %c0_i32_2 = arith.constant 0 : i32
    %8 = vector.broadcast %c0_i32_2 : i32 to vector<3x256xi32>
    %9 = arith.cmpi slt, %5, %8 : vector<3x256xi32>
    %c0_i32_3 = arith.constant 0 : i32
    %10 = arith.cmpi slt, %3, %c0_i32_3 : i32
    %11 = vector.broadcast %10 : i1 to vector<3x256xi1>
    %12 = vector.broadcast %11 : vector<3x256xi1> to vector<3x256xi1>
    %13 = arith.xori %9, %12 : vector<3x256xi1>
    %14 = arith.andi %13, %7 : vector<3x256xi1>
    %15 = vector.broadcast %3 : i32 to vector<3x256xi32>
    %16 = arith.addi %5, %15 : vector<3x256xi32>
    %17 = arith.select %14, %16, %5 : vector<3x256xi1>, vector<3x256xi32>
    %c255_i32 = arith.constant 255 : i32
    %18 = tpu.dynamic_rotate %0 by %c255_i32 dim 1 : vector<3x256xf32>, i32 -> vector<3x256xf32>
    %c15_i32 = arith.constant 15 : i32
    %19 = vector.broadcast %c15_i32 : i32 to vector<3x256xi32>
    %20 = arith.cmpi slt, %17, %19 : vector<3x256xi32>
    %c240_i32 = arith.constant 240 : i32
    %21 = tpu.dynamic_rotate %0 by %c240_i32 dim 1 : vector<3x256xf32>, i32 -> vector<3x256xf32>
    %c240_i32_4 = arith.constant 240 : i32
    %22 = vector.broadcast %c240_i32_4 : i32 to vector<3x256xi32>
    %23 = arith.cmpi slt, %1, %22 : vector<3x256xi32>
    %c16_i32_5 = arith.constant 16 : i32
    %24 = vector.broadcast %c16_i32_5 : i32 to vector<3x256xi32>
    %25 = arith.cmpi slt, %17, %24 : vector<3x256xi32>
    %26 = arith.andi %23, %25 : vector<3x256xi1>
    %27 = arith.subf %18, %0 : vector<3x256xf32>
    %cst = arith.constant 9.99999997E-7 : f32
    %28 = vector.broadcast %cst : f32 to vector<3x256xf32>
    %29 = arith.addf %27, %28 : vector<3x256xf32>
    %30 = math.absf %29 : vector<3x256xf32>
    %cst_6 = arith.constant 0.000000e+00 : f32
    %31 = vector.broadcast %cst_6 : f32 to vector<3x256xf32>
    %32 = arith.select %20, %30, %31 : vector<3x256xi1>, vector<3x256xf32>
    %33 = arith.subf %21, %0 : vector<3x256xf32>
    %cst_7 = arith.constant 9.99999997E-7 : f32
    %34 = vector.broadcast %cst_7 : f32 to vector<3x256xf32>
    %35 = arith.addf %33, %34 : vector<3x256xf32>
    %36 = math.absf %35 : vector<3x256xf32>
    %cst_8 = arith.constant 0.000000e+00 : f32
    %37 = vector.broadcast %cst_8 : f32 to vector<3x256xf32>
    %38 = arith.select %26, %36, %37 : vector<3x256xi1>, vector<3x256xf32>
    %39 = arith.addf %32, %38 : vector<3x256xf32>
    %40 = vector.shape_cast %39 : vector<3x256xf32> to vector<1x3x256xf32>
    %cst_9 = arith.constant dense<0.000000e+00> : vector<1xf32>
    %41 = vector.multi_reduction <add>, %40, %cst_9 [1, 2] : vector<1x3x256xf32> to vector<1xf32>
    %42 = vector.shape_cast %41 : vector<1xf32> to vector<1x1x1xf32>
    %43 = vector.extract %42[0, 0, 0] : f32 from vector<1x1x1xf32>
    %cst_10 = arith.constant 0.00130208337 : f32
    %44 = arith.mulf %43, %cst_10 : f32
    %c0_11 = arith.constant 0 : index
    %c0_12 = arith.constant 0 : index
    %45 = memref.load %arg1[%c0_11, %c0_12] : memref<1x1xf32, #tpu.memory_space<smem>>
    memref.store %44, %arg1[%c0_11, %c0_12] : memref<1x1xf32, #tpu.memory_space<smem>>
    return
  }
}

</mosaic_0001>

<llo_original>
// kernel: tpu_custom_call.1
$region0: #{tpu_custom_call.1}
  #allocation0 [shape = 'u32[]', space=smem, size = 0x4, offset = 0x4, fixed_abs, tag = 'smem constant byte address 0x4 - core index']
  #allocation1 [shape = 'u32[144,128]{1,0:T(1,128)}', space=vmem, size = 0x12000, scoped, tag = 'internal scratch']
  %s0 = inlined_call_operand.hbm [shape: f32[3,256], index: 0, kind: input, shape index: {}]
  %s1 = inlined_call_operand.hbm [shape: f32[1,1], index: 1, kind: output, shape index: {}]
  %s2 = sld [smem:[#allocation0]]
  $region18: #{tpu_custom_call.1} parent=0
    _
  %s4 = ssub.s32 1, %s2
  %s5 = scalar_select 0, %s4, %s2
  $region1: #{tpu_custom_call.1} parent=0
    #allocation2 [shape = 'u8[4096]{0}', space=vmem, size = 0x1000, scoped, tag = 'input window, operand 0, single buffered']
    #allocation3 [shape = 's32[1]{0}', space=sflag, size = 0x4, scoped, tag = 'scoped memory for tpu_custom_call.1']
    #allocation4 [shape = 's32[1]{0}', space=sflag, size = 0x4, scoped, tag = 'scoped memory for tpu_custom_call.1']
    #allocation5 [shape = 'u8[512]{0}', space=smem, size = 0x200, scoped, tag = 'output window, operand 0, single buffered']
    %6 = vsyncpa [#allocation3], 0
    %7 = vsyncpa [#allocation4], 0
    // Predicated region
    $region2: #{tpu_custom_call.1} parent=1 // pred_check
      _
    $region3: #{tpu_custom_call.1} parent=1 // pred_check_branch
      %9 = sbr.rel (0) target = $region5
    $region4: #{tpu_custom_call.1} parent=1 // pred_region
      %s11 = ssub.s32 128, 128
      %12 = vsyncadd [#allocation3], %s11
      %s14 = sshll.u32 [#allocation2], 4
      %s15 = int_to_ptr.vmem [resolvable:$true] %s14
      %17 = dma.hbm_to_vmem [thread:$0]  %s0, 128, %s15, [#allocation3]
    $region5: #{tpu_custom_call.1} parent=1 // pred_fallthru
      _
    // Predicated region
    $region6: #{tpu_custom_call.1} parent=1 // pred_check
      _
    $region7: #{tpu_custom_call.1} parent=1 // pred_check_branch
      %19 = sbr.rel (0) target = $region9
    $region8: #{tpu_custom_call.1} parent=1 // pred_region
      %20 = dma.done [#allocation3], 128
    $region9: #{tpu_custom_call.1} parent=1 // pred_fallthru
      _
    %v21 = vld [vmem:[#allocation2] sm:$0x77]
    %v22 = vlaneseq
    %v23 = vand.u32 %v22, 127
    %v24 = vadd.s32 %v23, 128
    %vm25 = vcmp.lt.s32.totalorder %v23, 0
    %v26 = vsub.s32 0, %v23
    %v27 = vsel %vm25, %v26, %v23
    %v28 = vshrl.u32 %v27, 4
    %v29 = vand.u32 %v27, 15
    %v30 = vsub.s32 0, %v29
    %v31 = vsel %vm25, %v30, %v29
    %vm32 = vcmp.lt.s32.totalorder %v24, 0
    %v33 = vsub.s32 0, %v24
    %v34 = vsel %vm32, %v33, %v24
    %v35 = vshrl.u32 %v34, 4
    %v36 = vand.u32 %v34, 15
    %v37 = vsub.s32 0, %v36
    %v38 = vsel %vm32, %v37, %v36
    %vm39 = vcmp.ne.s32.totalorder %v31, 0
    %vm40 = vcmp.ne.s32.totalorder %v38, 0
    %vm41 = vcmp.lt.s32.totalorder %v31, 0
    %vm42 = vcmp.lt.s32.totalorder %v38, 0
    %vm43 = vmand %vm41, %vm39
    %vm44 = vmand %vm42, %vm40
    %v45 = vadd.s32 %v31, 16
    %v46 = vadd.s32 %v38, 16
    %v47 = vsel %vm43, %v45, %v31
    %v48 = vsel %vm44, %v46, %v38
    %v50 = vcombine.high %v21, %v21
    %52 = vrot.lane.b32.xlu0 %v21, 127
    %v53 = vpop.permute.xlu0 %52
    %54 = vrot.lane.b32.xlu0 %v50, 127
    %v55 = vpop.permute.xlu0 %54
    %vm56 = vcmp.lt.s32.totalorder %v23, 127
    %v57 = vsel %vm56, %v53, %v55
    %v58 = vsel %vm56, %v55, %v53
    %vm59 = vcmp.lt.s32.totalorder %v47, 15
    %vm60 = vcmp.lt.s32.totalorder %v48, 15
    %61 = vrot.lane.b32.xlu0 %v21, 112
    %v62 = vpop.permute.xlu0 %61
    %63 = vrot.lane.b32.xlu0 %v50, 112
    %v64 = vpop.permute.xlu0 %63
    %vm65 = vcmp.lt.s32.totalorder %v23, 112
    %v66 = vsel %vm65, %v62, %v64
    %v67 = vsel %vm65, %v64, %v62
    %vm68 = vcmp.lt.s32.totalorder %v23, 240
    %vm69 = vcmp.lt.s32.totalorder %v24, 240
    %vm70 = vcmp.lt.s32.totalorder %v47, 16
    %vm71 = vcmp.lt.s32.totalorder %v48, 16
    %vm72 = vmand %vm68, %vm70
    %vm73 = vmand %vm69, %vm71
    %v74 = vsub.f32 %v57, %v21
    %v75 = vsub.f32 %v58, %v50
    %v76 = vadd.f32 %v74, 1e-06
    %v77 = vadd.f32 %v75, 1e-06
    %v78 = vand.u32 2147483647, %v76
    %v79 = vand.u32 2147483647, %v77
    %v80 = vsel %vm59, %v78, 0.0
    %v81 = vsel %vm60, %v79, 0.0
    %v82 = vsub.f32 %v66, %v21
    %v83 = vsub.f32 %v67, %v50
    %v84 = vadd.f32 %v82, 1e-06
    %v85 = vadd.f32 %v83, 1e-06
    %v86 = vand.u32 2147483647, %v84
    %v87 = vand.u32 2147483647, %v85
    %v88 = vsel %vm72, %v86, 0.0
    %v89 = vsel %vm73, %v87, 0.0
    %v90 = vadd.f32 %v80, %v88
    %v91 = vadd.f32 %v81, %v89
    %vm92 = vcmask 1042432
    %v93 = vsel %vm92, %v90, 0.0
    %v94 = vsel %vm92, %v91, 0.0
    %v95 = vadd.f32 %v93, %v94
    %96 = vadd.xlane.f32.xlu0 %v95
    %v97 = vpop.xlane.xlu0 %96
    %v98 = vrot.slane %v97, 4
    %v99 = vadd.f32 %v97, %v98
    %v100 = vrot.slane %v99, 2
    %v101 = vadd.f32 %v99, %v100
    %v102 = vrot.slane %v101, 1
    %v103 = vadd.f32 %v101, %v102
    %s104 = vtos %v103
    %s105 = smul.f32 %s104, 0.0013020834
    %s106 = scalar_lea.smem [#allocation5], 0
    %107 = sst [smem:[%s106]] %s105
    // Predicated region
    $region10: #{tpu_custom_call.1} parent=1 // pred_check
      _
    $region11: #{tpu_custom_call.1} parent=1 // pred_check_branch
      %109 = sbr.rel (0) target = $region13
    $region12: #{tpu_custom_call.1} parent=1 // pred_region
      %s111 = ssub.s32 16, 16
      %112 = vsyncadd [#allocation4], %s111
      %115 = dma.smem_to_hbm [#allocation5], 16, %s1, [#allocation4]
    $region13: #{tpu_custom_call.1} parent=1 // pred_fallthru
      _
    // Predicated region
    $region14: #{tpu_custom_call.1} parent=1 // pred_check
      _
    $region15: #{tpu_custom_call.1} parent=1 // pred_check_branch
      %117 = sbr.rel (0) target = $region17
    $region16: #{tpu_custom_call.1} parent=1 // pred_region
      %118 = dma.done [#allocation4], 16
    $region17: #{tpu_custom_call.1} parent=1 // pred_fallthru
      _
    %119 = sfence
    %120 = vsyncpa [#allocation3], 1
    %121 = vsyncpa [#allocation4], 1

</llo_original>
